<compile_context>
chip_gen: v5e
topology: v5e:2x2
jax: 0.10.0
libtpu: 0.0.40
codegen_flags: <defaults>
</compile_context>

<pallas_src>
import jax
import jax.numpy as jnp
from jax import lax
from jax.experimental import pallas as pl
from jax.experimental.pallas import tpu as pltpu


def mlp_kernel(x_ref, w1_ref, b1_ref, w2_ref, b2_ref, o_ref):
    x = x_ref[...]        # [TB, 10] f32, natural layout (no HBM transpose)
    w1 = w1_ref[...]      # [15, 10]
    b1 = b1_ref[...]      # [15, 1]
    w2c = w2_ref[...]     # [15, 1]   (column view of the [1, 15] weight)
    b2 = b2_ref[0, 0]     # scalar (SMEM)

    # Layer 1 + ReLU on the MXU.  Contract x's feature dim with W1's feature dim
    # (the Q@K^T pattern): h[j, b] = sum_k w1[j, k] * x[b, k]  -> [15, TB],
    # batch ends up on the lane axis without an explicit relayout of x.
    h = lax.dot_general(w1, x, (((1,), (1,)), ((), ())),
                        preferred_element_type=jnp.float32)        # [15, TB]
    h = jnp.maximum(h + b1, 0.0)

    # Layer 2 + Sigmoid on VPU + XLU (sublane reduce over the 15 hidden rows).
    z = jnp.sum(w2c * h, axis=0, keepdims=True) + b2               # [1, TB]
    o_ref[...] = jax.nn.sigmoid(z)                                 # lane-dense store


def _choose_batch_tile(B, *, max_tile=8192, target_steps=4):
    """Batch tile: multiple of 128 (unmasked lane-dense stores), capped at
    max_tile, but keeping >= target_steps grid steps so the parallel axis can
    shard across v7x's two TensorCores.  Tiny batches use one full-array tile."""
    if B <= 1024:
        return B
    tb = -(-B // target_steps)            # cdiv(B, target_steps)
    tb = ((tb + 127) // 128) * 128        # round up to a lane multiple
    return max(128, min(tb, max_tile))


def nn_model_forward(x, w1, b1, w2, b2, *, max_batch_tile=8192, target_steps=4):
    """x: [B, 10]; w1: [15, 10]; b1: [15]; w2: [1, 15]; b2: [1] (PyTorch layout)."""
    B, in_f = x.shape
    hid = w1.shape[0]

    TB = _choose_batch_tile(B, max_tile=max_batch_tile, target_steps=target_steps)
    grid = (pl.cdiv(B, TB),)

    b1c = b1.reshape(hid, 1).astype(jnp.float32)
    w2c = w2.reshape(hid, 1).astype(jnp.float32)   # [1,15] -> [15,1] column
    b2s = b2.reshape(1, 1).astype(jnp.float32)

    weight_bytes = (hid * in_f + hid + hid + 1) * 4
    cost = pl.CostEstimate(
        flops=int(2 * B * (in_f * hid + hid)),
        transcendentals=int(B),                          # one exp per sigmoid
        bytes_accessed=int(B * (in_f * 4 + 4) + weight_bytes),
    )

    out_t = pl.pallas_call(
        mlp_kernel,
        out_shape=jax.ShapeDtypeStruct((1, B), jnp.float32),
        grid=grid,
        in_specs=[
            pl.BlockSpec((TB, in_f), lambda i: (i, 0)),        # x batch tile (natural layout)
            pl.BlockSpec((hid, in_f), lambda i: (0, 0)),       # W1 resident in VMEM
            pl.BlockSpec((hid, 1), lambda i: (0, 0)),          # b1 resident in VMEM
            pl.BlockSpec((hid, 1), lambda i: (0, 0)),          # W2 column resident in VMEM
            pl.BlockSpec((1, 1), lambda i: (0, 0),
                         memory_space=pltpu.SMEM),             # b2 scalar in SMEM
        ],
        out_specs=pl.BlockSpec((1, TB), lambda i: (0, i)),     # lane-dense output slab
        compiler_params=pltpu.CompilerParams(
            dimension_semantics=("parallel",),
            vmem_limit_bytes=32 * 1024 * 1024,
        ),
        cost_estimate=cost,
    )(x, w1, b1c, w2c, b2s)

    return out_t.reshape(B, 1)


def init_params(key):
    # Deterministic init mimicking PyTorch nn.Linear default:
    # U(-1/sqrt(fan_in), 1/sqrt(fan_in)), weights in [out_features, in_features].
    k1, k2, k3, k4 = jax.random.split(key, 4)
    bound1 = 1.0 / jnp.sqrt(10.0)
    bound2 = 1.0 / jnp.sqrt(15.0)
    w1 = jax.random.uniform(k1, (15, 10), jnp.float32, -bound1, bound1)
    b1 = jax.random.uniform(k2, (15,), jnp.float32, -bound1, bound1)
    w2 = jax.random.uniform(k3, (1, 15), jnp.float32, -bound2, bound2)
    b2 = jax.random.uniform(k4, (1,), jnp.float32, -bound2, bound2)
    return w1, b1, w2, b2


if __name__ == "__main__":
    key = jax.random.PRNGKey(0)
    kx, kp = jax.random.split(key)
    w1, b1, w2, b2 = init_params(kp)

    def reference(x):
        # Same math as the PyTorch forward.
        return jax.nn.sigmoid(jnp.maximum(x @ w1.T + b1, 0.0) @ w2.T + b2)

    # Small shape consistent with the module (batch=8, in_features=10): one tile.
    x_small = jax.random.normal(kx, (8, 10), jnp.float32)
    out_small = jax.block_until_ready(nn_model_forward(x_small, w1, b1, w2, b2))
    assert out_small.shape == (8, 1)
    assert jnp.allclose(out_small, reference(x_small), atol=1e-5), "mismatch (small batch)"

    # Multi-step pipelined grid: 4 steps of 1024-row lane-dense tiles.
    x_big = jax.random.normal(kx, (4096, 10), jnp.float32)
    out_big = jax.block_until_ready(nn_model_forward(x_big, w1, b1, w2, b2))
    assert out_big.shape == (4096, 1)
    assert jnp.allclose(out_big, reference(x_big), atol=1e-5), "mismatch (batched grid)"

    # Ragged batch exercising the masked partial last tile.
    x_rag = jax.random.normal(kx, (5000, 10), jnp.float32)
    out_rag = jax.block_until_ready(nn_model_forward(x_rag, w1, b1, w2, b2))
    assert out_rag.shape == (5000, 1)
    assert jnp.allclose(out_rag, reference(x_rag), atol=1e-5), "mismatch (ragged batch)"

    print("KERNEL_OK")
</pallas_src>

<mosaic_0001>
module attributes {stable_mosaic.version = 11 : i64} {
  func.func @mlp_kernel(%arg0: i32, %arg1: memref<8x10xf32, #tpu.memory_space<vmem>>, %arg2: memref<15x10xf32, #tpu.memory_space<vmem>>, %arg3: memref<15x1xf32, #tpu.memory_space<vmem>>, %arg4: memref<15x1xf32, #tpu.memory_space<vmem>>, %arg5: memref<1x1xf32, #tpu.memory_space<smem>>, %arg6: memref<1x8xf32, #tpu.memory_space<vmem>>) attributes {dimension_semantics = [#tpu.dimension_semantics<parallel>], iteration_bounds = array<i64: 1>, scalar_prefetch = 0 : i64, scratch_operands = 0 : i64, tpu.core_type = #tpu.core_type<tc>, window_params = [{transform_indices = @transform_0, window_bounds = array<i64: 8, 10>}, {pipeline_mode = #tpu.pipeline_mode<synchronous>, transform_indices = @transform_1, window_bounds = array<i64: 15, 10>}, {pipeline_mode = #tpu.pipeline_mode<synchronous>, transform_indices = @transform_2, window_bounds = array<i64: 15, 1>}, {pipeline_mode = #tpu.pipeline_mode<synchronous>, transform_indices = @transform_3, window_bounds = array<i64: 15, 1>}, {transform_indices = @transform_4, window_bounds = array<i64: 1, 1>}, {transform_indices = @transform_5, window_bounds = array<i64: 1, 8>}]} {
    %c0 = arith.constant 0 : index
    %c0_0 = arith.constant 0 : index
    %0 = vector.load %arg1[%c0, %c0_0] : memref<8x10xf32, #tpu.memory_space<vmem>>, vector<8x10xf32>
    %c0_1 = arith.constant 0 : index
    %c0_2 = arith.constant 0 : index
    %1 = vector.load %arg2[%c0_1, %c0_2] : memref<15x10xf32, #tpu.memory_space<vmem>>, vector<15x10xf32>
    %c0_3 = arith.constant 0 : index
    %c0_4 = arith.constant 0 : index
    %2 = vector.load %arg3[%c0_3, %c0_4] : memref<15x1xf32, #tpu.memory_space<vmem>>, vector<15x1xf32>
    %c0_5 = arith.constant 0 : index
    %c0_6 = arith.constant 0 : index
    %3 = vector.load %arg4[%c0_5, %c0_6] : memref<15x1xf32, #tpu.memory_space<vmem>>, vector<15x1xf32>
    %c0_7 = arith.constant 0 : index
    %c0_8 = arith.constant 0 : index
    %4 = memref.load %arg5[%c0_7, %c0_8] : memref<1x1xf32, #tpu.memory_space<smem>>
    %cst = arith.constant dense<0.000000e+00> : vector<15x8xf32>
    %5 = tpu.matmul %1, %0, %cst {dimension_numbers = #tpu.dot_dimension_numbers<[1], [1], [0], [0], [0, 0, 1, 0], [], []>} : vector<15x10xf32>, vector<8x10xf32>, vector<15x8xf32> -> vector<15x8xf32>
    %6 = vector.broadcast %2 : vector<15x1xf32> to vector<15x8xf32>
    %7 = arith.addf %5, %6 : vector<15x8xf32>
    %cst_9 = arith.constant 0.000000e+00 : f32
    %8 = vector.broadcast %cst_9 : f32 to vector<15x8xf32>
    %9 = arith.maximumf %7, %8 : vector<15x8xf32>
    %10 = vector.broadcast %3 : vector<15x1xf32> to vector<15x8xf32>
    %11 = arith.mulf %10, %9 : vector<15x8xf32>
    %cst_10 = arith.constant dense<0.000000e+00> : vector<8xf32>
    %12 = vector.multi_reduction <add>, %11, %cst_10 [0] : vector<15x8xf32> to vector<8xf32>
    %13 = vector.shape_cast %12 : vector<8xf32> to vector<1x8xf32>
    %14 = vector.broadcast %4 : f32 to vector<1x8xf32>
    %15 = arith.addf %13, %14 : vector<1x8xf32>
    %16 = arith.negf %15 : vector<1x8xf32>
    %17 = math.exp %16 : vector<1x8xf32>
    %cst_11 = arith.constant 1.000000e+00 : f32
    %18 = vector.broadcast %cst_11 : f32 to vector<1x8xf32>
    %19 = arith.addf %18, %17 : vector<1x8xf32>
    %20 = arith.divf %18, %19 : vector<1x8xf32>
    %c0_12 = arith.constant 0 : index
    %c0_13 = arith.constant 0 : index
    %21 = vector.load %arg6[%c0_12, %c0_13] : memref<1x8xf32, #tpu.memory_space<vmem>>, vector<1x8xf32>
    tpu.vector_store %arg6[%c0_12, %c0_13], %20 {strides = array<i32>} : memref<1x8xf32, #tpu.memory_space<vmem>>, vector<1x8xf32>,
    return
  }
  func.func @transform_0(%arg0: i32) -> (i32, i32) {
    %c0_i32 = arith.constant 0 : i32
    %c0_i32_0 = arith.constant 0 : i32
    return %arg0, %c0_i32 : i32, i32
  }
  func.func @transform_1(%arg0: i32) -> (i32, i32) {
    %c0_i32 = arith.constant 0 : i32
    %c0_i32_0 = arith.constant 0 : i32
    %c0_i32_1 = arith.constant 0 : i32
    return %c0_i32, %c0_i32_0 : i32, i32
  }
  func.func @transform_2(%arg0: i32) -> (i32, i32) {
    %c0_i32 = arith.constant 0 : i32
    %c0_i32_0 = arith.constant 0 : i32
    %c0_i32_1 = arith.constant 0 : i32
    return %c0_i32, %c0_i32_0 : i32, i32
  }
  func.func @transform_3(%arg0: i32) -> (i32, i32) {
    %c0_i32 = arith.constant 0 : i32
    %c0_i32_0 = arith.constant 0 : i32
    %c0_i32_1 = arith.constant 0 : i32
    return %c0_i32, %c0_i32_0 : i32, i32
  }
  func.func @transform_4(%arg0: i32) -> (i32, i32) {
    %c0_i32 = arith.constant 0 : i32
    %c0_i32_0 = arith.constant 0 : i32
    %c0_i32_1 = arith.constant 0 : i32
    return %c0_i32, %c0_i32_0 : i32, i32
  }
  func.func @transform_5(%arg0: i32) -> (i32, i32) {
    %c0_i32 = arith.constant 0 : i32
    %c0_i32_0 = arith.constant 0 : i32
    return %c0_i32, %arg0 : i32, i32
  }
}

</mosaic_0001>

<llo_original>
// kernel: tpu_custom_call.1
$region0: #{tpu_custom_call.1}
  #allocation0 [shape = 'u32[]', space=smem, size = 0x4, offset = 0x4, fixed_abs, tag = 'smem constant byte address 0x4 - core index']
  #allocation1 [shape = 'u32[72,128]{1,0:T(1,128)}', space=vmem, size = 0x9000, scoped, tag = 'internal scratch']
  #allocation2 [shape = 'f32[1,1]{1,0:T(1,128)S(6)}', space=smem, size = 0x200, scoped, tag = 'scoped memory for tpu_custom_call.1']
  %s0 = inlined_call_operand.vmem [shape: f32[8,10], index: 0, kind: input, shape index: {}]
  %s1 = inlined_call_operand.vmem [shape: f32[15,10], index: 1, kind: input, shape index: {}]
  %s2 = inlined_call_operand.vmem [shape: f32[15,1], index: 2, kind: input, shape index: {}]
  %s3 = inlined_call_operand.vmem [shape: f32[15,1], index: 3, kind: input, shape index: {}]
  %s4 = inlined_call_operand.<no memory space> [shape: f32[1,1], index: 4, kind: input, shape index: {}]
  %s5 = inlined_call_operand.hbm [shape: f32[1,8], index: 5, kind: output, shape index: {}]
  %s6 = sld [smem:[#allocation0]]
  $region30: #{tpu_custom_call.1} parent=0
    _
  %s8 = ssub.s32 1, %s6
  %s9 = scalar_select 0, %s8, %s6
  %10 = sst [smem:[#allocation2]] %s4
  $region1: #{tpu_custom_call.1} parent=0
    #allocation3 [shape = 'u8[512]{0}', space=vmem, size = 0x400, scoped, tag = 'output window, operand 0, single buffered']
    #allocation4 [shape = 's32[1]{0}', space=sflag, size = 0x4, scoped, tag = 'scoped memory for tpu_custom_call.1']
    %11 = vsyncpa [#allocation4], 0
    // Predicated region
    $region2: #{tpu_custom_call.1} parent=1 // pred_check
      _
    $region3: #{tpu_custom_call.1} parent=1 // pred_check_branch
      %13 = sbr.rel (0) target = $region5
    $region4: #{tpu_custom_call.1} parent=1 // pred_region
      _
    $region5: #{tpu_custom_call.1} parent=1 // pred_fallthru
      _
    // Predicated region
    $region6: #{tpu_custom_call.1} parent=1 // pred_check
      _
    $region7: #{tpu_custom_call.1} parent=1 // pred_check_branch
      %15 = sbr.rel (0) target = $region9
    $region8: #{tpu_custom_call.1} parent=1 // pred_region
      _
    $region9: #{tpu_custom_call.1} parent=1 // pred_fallthru
      _
    // Predicated region
    $region10: #{tpu_custom_call.1} parent=1 // pred_check
      _
    $region11: #{tpu_custom_call.1} parent=1 // pred_check_branch
      %17 = sbr.rel (0) target = $region13
    $region12: #{tpu_custom_call.1} parent=1 // pred_region
      _
    $region13: #{tpu_custom_call.1} parent=1 // pred_fallthru
      _
    // Predicated region
    $region14: #{tpu_custom_call.1} parent=1 // pred_check
      _
    $region15: #{tpu_custom_call.1} parent=1 // pred_check_branch
      %19 = sbr.rel (0) target = $region17
    $region16: #{tpu_custom_call.1} parent=1 // pred_region
      _
    $region17: #{tpu_custom_call.1} parent=1 // pred_fallthru
      _
    // Predicated region
    $region18: #{tpu_custom_call.1} parent=1 // pred_check
      _
    $region19: #{tpu_custom_call.1} parent=1 // pred_check_branch
      %21 = sbr.rel (0) target = $region21
    $region20: #{tpu_custom_call.1} parent=1 // pred_region
      _
    $region21: #{tpu_custom_call.1} parent=1 // pred_fallthru
      _
    %v22 = vld [vmem:[%s0] sm:$0xff]
    %v23 = vld [vmem:[%s1] sm:$0xff]
    %v24 = vld [vmem:[%s1 + $0x8] sm:$0x7f]
    %v25 = vld [vmem:[%s2] sm:$0xff]
    %v26 = vld [vmem:[%s2 + $0x8] sm:$0x7f]
    %v27 = vld [vmem:[%s3] sm:$0xff]
    %v28 = vld [vmem:[%s3 + $0x8] sm:$0x7f]
    %s29 = sld [smem:[#allocation2]]
    %31 = vset.pattern.permute.xlu0 0
    %32 = vperm.xlu0 %31, %v25
    %v33 = vpop.permute.xlu0 %32
    %36 = vset.pattern.permute.xlu0 0
    %37 = vperm.xlu0 %36, %v26
    %v38 = vpop.permute.xlu0 %37
    %vm40 = vcmask 80896
    %v42 = vsel %vm40, %v23, 0
    %v45 = vsel %vm40, %v24, 0
    %v48 = vsel %vm40, %v22, 0
    %50 = vmatpush.xpose.msra.mxu0 0.0
    %51 = vmatpush.xpose.msra.mxu0 0.0
    %52 = vmatpush.xpose.msra.mxu0 0.0
    %53 = vmatpush.xpose.msra.mxu0 0.0
    %54 = vmatpush.xpose.msra.mxu0 0.0
    %55 = vmatpush.xpose.msra.mxu0 0.0
    %56 = vmatpush.xpose.msra.mxu0 0.0
    %57 = vmatpush.xpose.msra.mxu0 0.0
    %58 = vmatpush.xpose.msra.mxu0 0.0
    %59 = vmatpush.xpose.msra.mxu0 0.0
    %60 = vmatpush.xpose.msra.mxu0 0.0
    %61 = vmatpush.xpose.msra.mxu0 0.0
    %62 = vmatpush.xpose.msra.mxu0 0.0
    %63 = vmatpush.xpose.msra.mxu0 0.0
    %64 = vmatpush.xpose.msra.mxu0 0.0
    %65 = vmatpush.xpose.msra.mxu0 %v48
    %66 = vmatmul.f32.gmra.mxu0 %v42
    %v67 = vpop.f32.mrf.mxu0
    %v68 = vadd.f32 %v33, %v67
    %69 = vmatmul.f32.gmra.mxu0 %v45
    %v70 = vpop.f32.mrf.mxu0
    %v71 = vadd.f32 %v38, %v70
    %72 = vdwg.mxu0
    %v73 = vmax.f32 %v68, 0.0
    %v74 = vmax.f32 %v71, 0.0
    %76 = vset.pattern.permute.xlu0 0
    %77 = vperm.xlu0 %76, %v27
    %v78 = vpop.permute.xlu0 %77
    %81 = vset.pattern.permute.xlu0 0
    %82 = vperm.xlu0 %81, %v28
    %v83 = vpop.permute.xlu0 %82
    %v85 = vmul.f32 %v78, %v73
    %v86 = vmul.f32 %v83, %v74
    %vm87 = vcmask 64512
    %v88 = vsel %vm87, %v85, 0.0
    %vm89 = vcmask 63488
    %v90 = vsel %vm89, %v86, 0.0
    %v91 = vadd.f32 %v88, %v90
    %v92 = vrot.slane %v91, 4
    %v93 = vadd.f32 %v91, %v92
    %v94 = vrot.slane %v93, 2
    %v95 = vadd.f32 %v93, %v94
    %v96 = vrot.slane %v95, 1
    %v97 = vadd.f32 %v95, %v96
    %v98 = vstv %s29
    %v99 = vadd.f32 %v97, %v98
    %v100 = vxor.u32 %v99, 2147483648
    %v101 = vmul.f32 %v100, 1.442695
    %v102 = vpow.pop %v101
    %v103 = vadd.f32 %v102, 1.0
    %v104 = vrcp.pop %v103
    %v105 = vmul.f32 %v103, %v104
    %v106 = vsub.f32 1.0, %v105
    %v107 = vmul.f32 %v104, %v106
    %v108 = vadd.f32 %v104, %v107
    %vm109 = vweird.f32 %v103
    %vm110 = vweird.f32 %v104
    %vm111 = vmor %vm109, %vm110
    %v112 = vsel %vm111, %v104, %v108
    %v113 = vand.u32 2147483647, %v103
    %vm114 = vcmp.eq.f32.partialorder %v113, 8.507059e+37
    %v115 = vand.u32 %v103, 2147483648
    %v116 = vor.u32 1.1754944e-38, %v115
    %v117 = vsel %vm114, %v116, %v112
    %v118 = vmul.f32 1.0, %v117
    %vm119 = vcmask 57344
    %120 = vst.msk [vmem:[#allocation3] sm:$0x1] %vm119, %v118
    // Predicated region
    $region22: #{tpu_custom_call.1} parent=1 // pred_check
      _
    $region23: #{tpu_custom_call.1} parent=1 // pred_check_branch
      %122 = sbr.rel (0) target = $region25
    $region24: #{tpu_custom_call.1} parent=1 // pred_region
      %124 = vsyncadd [#allocation4], 0
      %s126 = sshll.u32 [#allocation3], 4
      %s127 = int_to_ptr.vmem [resolvable:$true] %s126
      %s128 = sshll.u32 %s5, 4
      %s129 = int_to_ptr.hbm [resolvable:$true] %s128
      %131 = dma.vmem_to_hbm [thread:$0]  %s127, 16, %s129, [#allocation4]
    $region25: #{tpu_custom_call.1} parent=1 // pred_fallthru
      _
    // Predicated region
    $region26: #{tpu_custom_call.1} parent=1 // pred_check
      _
    $region27: #{tpu_custom_call.1} parent=1 // pred_check_branch
      %133 = sbr.rel (0) target = $region29
    $region28: #{tpu_custom_call.1} parent=1 // pred_region
      %135 = dma.done [#allocation4], 16
    $region29: #{tpu_custom_call.1} parent=1 // pred_fallthru
      _
    %136 = vsyncpa [#allocation4], 1

</llo_original>
